<compile_context>
chip_gen: v5e
topology: v5e:2x2
jax: 0.10.0
libtpu: 0.0.40
codegen_flags: <defaults>
</compile_context>

<pallas_src>
import math

import jax
import jax.numpy as jnp
from jax.experimental import pallas as pl
from jax.experimental.pallas import tpu as pltpu

DEFAULT_BLOCK_M = 512  # row-tile upper bound (multiple of 8 sublanes)


def _round_up(x, m):
    return ((x + m - 1) // m) * m


def _cdiv(a, b):
    return -(-a // b)


# ---------------------------------------------------------------------------
# Fused kernel (network structure is static at trace time)
# ---------------------------------------------------------------------------
def _make_fused_mlp_kernel(num_hidden, has_output_layer):
    def kernel(*refs):
        # refs = x_ref, (w_ref, shift_ref) * num_hidden,
        #        [out_w_ref, out_b_ref], o_ref
        x_ref = refs[0]
        h = x_ref[...]                                       # (tm, d) bf16
        idx = 1
        for _ in range(num_hidden):
            w_ref, t_ref = refs[idx], refs[idx + 1]
            idx += 2
            # Linear + folded BatchNorm (scale in W, shift in t) + ReLU;
            # Dropout = identity (inference).  bf16 x bf16 -> f32 accumulate,
            # f32 epilogue, re-cast to bf16 so the next matmul stays bf16-MXU.
            acc = jnp.dot(h, w_ref[...], preferred_element_type=jnp.float32)
            h = jnp.maximum(acc + t_ref[...], 0.0).astype(jnp.bfloat16)
        if has_output_layer:
            wo_ref, bo_ref = refs[idx], refs[idx + 1]
            idx += 2
            o_ref = refs[idx]
            # N=1 head: VPU multiply + lane reduce in f32 (avoids an almost
            # empty MXU matmul); out_w kept f32 so the epilogue is f32 on v5e.
            y = jnp.sum(h * wo_ref[...], axis=-1, keepdims=True) + bo_ref[...]
            o_ref[...] = y.astype(o_ref.dtype)
        else:
            o_ref = refs[idx]
            o_ref[...] = h.astype(o_ref.dtype)

    return kernel


# ---------------------------------------------------------------------------
# Forward pass (matches PyTorch MultiLayerPerceptron.forward, eval mode)
# ---------------------------------------------------------------------------
def _mlp_forward(params, x, block_m=DEFAULT_BLOCK_M, single_buffer_consts=True):
    shape0, shape1 = x.shape[0], x.shape[1]
    d = x.shape[-1]
    # bf16 row stream: the only per-tile DMA that scales with M.
    h = x.reshape(-1, d).astype(jnp.bfloat16)                # (M, d)
    m = h.shape[0]

    num_hidden = len(params["layers"])
    has_out = "out_w" in params                              # static (pytree keys)

    # ---- row tiling --------------------------------------------------------
    num_tiles = max(1, _cdiv(m, block_m))
    if num_tiles == 1 and m >= 256:
        num_tiles = 2                                        # v7x: feed both TCs
    tm = _round_up(_cdiv(m, num_tiles), 8)                   # <= 7 padded rows/tile
    m_pad = num_tiles * tm
    if m_pad != m:
        h = jnp.pad(h, ((0, m_pad - m), (0, 0)))             # single pad

    # Constant-index operands never re-DMA; single-buffer them so double
    # buffering doesn't double their VMEM footprint (key on v7x's 64 MiB).
    const_kw = dict(pipeline_mode=pl.Buffered(1)) if single_buffer_consts else {}

    operands = [h]
    in_specs = [pl.BlockSpec((tm, d), lambda i: (i, 0))]
    widths = [d]
    for layer in params["layers"]:
        w_t, shift = layer["w_t"], layer["shift"]            # (in,out) bf16 / (1,out) f32
        widths.append(w_t.shape[1])
        operands += [w_t, shift]
        in_specs += [
            pl.BlockSpec(w_t.shape, lambda i: (0, 0), **const_kw),   # VMEM-resident
            pl.BlockSpec(shift.shape, lambda i: (0, 0), **const_kw),
        ]

    if has_out:
        wo, bo = params["out_w"], params["out_b"]            # (1,h_last) f32, (1,1) f32
        operands += [wo, bo]
        in_specs += [
            pl.BlockSpec(wo.shape, lambda i: (0, 0), **const_kw),
            pl.BlockSpec(bo.shape, lambda i: (0, 0), **const_kw),
        ]
        n_out = 1
    else:
        n_out = widths[-1]

    # ---- VMEM budget & cost estimate (all static python ints) --------------
    def _nbytes(a):
        return int(a.size) * a.dtype.itemsize

    const_bytes = sum(_nbytes(a) for a in operands[1:])
    const_bufs = 1 if single_buffer_consts else 2
    tile_bytes = 2 * tm * d * 2 + 2 * tm * n_out * 4         # dbl-buffered in/out tiles
    act_bytes = 2 * tm * max(widths) * 4                     # intermediate activations
    vmem_needed = const_bufs * const_bytes + tile_bytes + act_bytes
    vmem_limit = int(min(max(2 * vmem_needed + (4 << 20), 32 << 20), 64 << 20))

    flops = 0
    for i in range(num_hidden):
        flops += 2 * m_pad * widths[i] * widths[i + 1]
    if has_out:
        flops += 2 * m_pad * widths[-1]
    bytes_accessed = _nbytes(h) + const_bytes + m_pad * n_out * 4

    out = pl.pallas_call(
        _make_fused_mlp_kernel(num_hidden, has_out),
        out_shape=jax.ShapeDtypeStruct((m_pad, n_out), jnp.float32),
        grid=(num_tiles,),
        in_specs=in_specs,
        out_specs=pl.BlockSpec((tm, n_out), lambda i: (i, 0)),
        compiler_params=pltpu.CompilerParams(
            dimension_semantics=("parallel",),
            vmem_limit_bytes=vmem_limit),
        cost_estimate=pl.CostEstimate(
            flops=flops, transcendentals=0, bytes_accessed=bytes_accessed),
    )(*operands)

    out = out[:m]                                            # drop padded rows
    if has_out:
        return out.reshape(shape0, shape1)
    return out.reshape(shape0, shape1, -1)


mlp_forward = jax.jit(_mlp_forward,
                      static_argnames=("block_m", "single_buffer_consts"))


# ---------------------------------------------------------------------------
# Parameter construction (deterministic, synthetic; BN scale folded into W)
# ---------------------------------------------------------------------------
def init_mlp_params(key, input_dim, embed_dims, output_layer=True):
    eps = 1e-5
    params = {"layers": []}
    in_dim = input_dim
    for embed_dim in embed_dims:
        key, kw, kb = jax.random.split(key, 3)
        bound = 1.0 / math.sqrt(in_dim)
        w = jax.random.uniform(kw, (embed_dim, in_dim), jnp.float32, -bound, bound)
        b = jax.random.uniform(kb, (embed_dim,), jnp.float32, -bound, bound)
        # BatchNorm1d (inference): gamma=1, beta=0, running_mean=0, running_var=1
        gamma = jnp.ones((embed_dim,), jnp.float32)
        beta = jnp.zeros((embed_dim,), jnp.float32)
        run_mean = jnp.zeros((embed_dim,), jnp.float32)
        run_var = jnp.ones((embed_dim,), jnp.float32)
        scale = gamma / jnp.sqrt(run_var + eps)              # per-feature
        shift = beta - run_mean * scale + b * scale          # bias folded in
        params["layers"].append(dict(
            w_t=(jnp.asarray(w.T) * scale[None, :]).astype(jnp.bfloat16),  # (in,out)
            shift=shift.reshape(1, -1),                      # f32 epilogue
        ))
        in_dim = embed_dim
    if output_layer:
        key, kw, kb = jax.random.split(key, 3)
        bound = 1.0 / math.sqrt(in_dim)
        w = jax.random.uniform(kw, (1, in_dim), jnp.float32, -bound, bound)
        b = jax.random.uniform(kb, (1,), jnp.float32, -bound, bound)
        params["out_w"] = w                                  # (1, in) f32 (VPU head)
        params["out_b"] = b.reshape(1, 1)                    # (1, 1)  f32
    # Output-layer presence is encoded in the (static) pytree structure.
    return params


# ---------------------------------------------------------------------------
# Pure-JAX reference (mirrors the kernel's bf16-in / f32-accumulate numerics)
# ---------------------------------------------------------------------------
def mlp_reference(params, x):
    shape0, shape1 = x.shape[0], x.shape[1]
    h = x.reshape(-1, x.shape[-1]).astype(jnp.bfloat16)
    for layer in params["layers"]:
        acc = jnp.dot(h, layer["w_t"], preferred_element_type=jnp.float32)
        h = jnp.maximum(acc + layer["shift"], 0.0).astype(jnp.bfloat16)
    if "out_w" in params:
        y = jnp.sum(h * params["out_w"], axis=-1, keepdims=True) + params["out_b"]
        return y.astype(jnp.float32).reshape(shape0, shape1)
    return h.astype(jnp.float32).reshape(shape0, shape1, -1)


if __name__ == "__main__":
    key = jax.random.PRNGKey(0)
    k_x, k_p = jax.random.split(key)

    batch, num_fields, embed_dim = 2, 4, 16
    embed_dims = (32, 16)
    dropout = 0.1  # inference -> identity

    x = jax.random.normal(k_x, (batch, num_fields, embed_dim), jnp.float32)
    params = init_mlp_params(k_p, embed_dim, embed_dims, output_layer=True)

    try:
        out = jax.block_until_ready(mlp_forward(params, x))
    except Exception:
        # Fallback if this JAX build rejects pipeline_mode=pl.Buffered(1) on the
        # constant operands (optional VMEM optimisation; numerics unchanged).
        out = jax.block_until_ready(mlp_forward(params, x,
                                                single_buffer_consts=False))

    ref = mlp_reference(params, x)
    assert out.shape == (batch, num_fields), out.shape
    # bf16 weights/activations: compare against the bf16-matched reference.
    assert jnp.allclose(out, ref, atol=1e-3, rtol=1e-3), "mismatch vs reference"

    print("KERNEL_OK")
</pallas_src>

<mosaic_0001>
module attributes {stable_mosaic.version = 11 : i64} {
  func.func @kernel(%arg0: i32, %arg1: memref<8x16xbf16, #tpu.memory_space<vmem>>, %arg2: memref<16x32xbf16, #tpu.memory_space<vmem>>, %arg3: memref<1x32xf32, #tpu.memory_space<vmem>>, %arg4: memref<32x16xbf16, #tpu.memory_space<vmem>>, %arg5: memref<1x16xf32, #tpu.memory_space<vmem>>, %arg6: memref<1x16xf32, #tpu.memory_space<vmem>>, %arg7: memref<1x1xf32, #tpu.memory_space<vmem>>, %arg8: memref<8x1xf32, #tpu.memory_space<vmem>>) attributes {dimension_semantics = [#tpu.dimension_semantics<parallel>], iteration_bounds = array<i64: 1>, scalar_prefetch = 0 : i64, scratch_operands = 0 : i64, tpu.core_type = #tpu.core_type<tc>, window_params = [{transform_indices = @transform_0, window_bounds = array<i64: 8, 16>}, {pipeline_mode = #tpu.pipeline_mode<synchronous>, transform_indices = @transform_1, window_bounds = array<i64: 16, 32>}, {pipeline_mode = #tpu.pipeline_mode<synchronous>, transform_indices = @transform_2, window_bounds = array<i64: 1, 32>}, {pipeline_mode = #tpu.pipeline_mode<synchronous>, transform_indices = @transform_3, window_bounds = array<i64: 32, 16>}, {pipeline_mode = #tpu.pipeline_mode<synchronous>, transform_indices = @transform_4, window_bounds = array<i64: 1, 16>}, {pipeline_mode = #tpu.pipeline_mode<synchronous>, transform_indices = @transform_5, window_bounds = array<i64: 1, 16>}, {pipeline_mode = #tpu.pipeline_mode<synchronous>, transform_indices = @transform_6, window_bounds = array<i64: 1, 1>}, {transform_indices = @transform_7, window_bounds = array<i64: 8, 1>}]} {
    %c0 = arith.constant 0 : index
    %c0_0 = arith.constant 0 : index
    %0 = vector.load %arg1[%c0, %c0_0] : memref<8x16xbf16, #tpu.memory_space<vmem>>, vector<8x16xbf16>
    %c0_1 = arith.constant 0 : index
    %c0_2 = arith.constant 0 : index
    %1 = vector.load %arg2[%c0_1, %c0_2] : memref<16x32xbf16, #tpu.memory_space<vmem>>, vector<16x32xbf16>
    %cst = arith.constant dense<0.000000e+00> : vector<8x32xf32>
    %2 = tpu.matmul %0, %1, %cst {dimension_numbers = #tpu.dot_dimension_numbers<[1], [0], [0], [1], [0, 0, 1, 1], [], []>} : vector<8x16xbf16>, vector<16x32xbf16>, vector<8x32xf32> -> vector<8x32xf32>
    %c0_3 = arith.constant 0 : index
    %c0_4 = arith.constant 0 : index
    %3 = vector.load %arg3[%c0_3, %c0_4] : memref<1x32xf32, #tpu.memory_space<vmem>>, vector<1x32xf32>
    %4 = vector.broadcast %3 : vector<1x32xf32> to vector<8x32xf32>
    %5 = arith.addf %2, %4 : vector<8x32xf32>
    %cst_5 = arith.constant 0.000000e+00 : f32
    %6 = vector.broadcast %cst_5 : f32 to vector<8x32xf32>
    %7 = arith.maximumf %5, %6 : vector<8x32xf32>
    %8 = arith.truncf %7 : vector<8x32xf32> to vector<8x32xbf16>
    %c0_6 = arith.constant 0 : index
    %c0_7 = arith.constant 0 : index
    %9 = vector.load %arg4[%c0_6, %c0_7] : memref<32x16xbf16, #tpu.memory_space<vmem>>, vector<32x16xbf16>
    %cst_8 = arith.constant dense<0.000000e+00> : vector<8x16xf32>
    %10 = tpu.matmul %8, %9, %cst_8 {dimension_numbers = #tpu.dot_dimension_numbers<[1], [0], [0], [1], [0, 0, 1, 1], [], []>} : vector<8x32xbf16>, vector<32x16xbf16>, vector<8x16xf32> -> vector<8x16xf32>
    %c0_9 = arith.constant 0 : index
    %c0_10 = arith.constant 0 : index
    %11 = vector.load %arg5[%c0_9, %c0_10] : memref<1x16xf32, #tpu.memory_space<vmem>>, vector<1x16xf32>
    %12 = vector.broadcast %11 : vector<1x16xf32> to vector<8x16xf32>
    %13 = arith.addf %10, %12 : vector<8x16xf32>
    %cst_11 = arith.constant 0.000000e+00 : f32
    %14 = vector.broadcast %cst_11 : f32 to vector<8x16xf32>
    %15 = arith.maximumf %13, %14 : vector<8x16xf32>
    %16 = arith.truncf %15 : vector<8x16xf32> to vector<8x16xbf16>
    %c0_12 = arith.constant 0 : index
    %c0_13 = arith.constant 0 : index
    %17 = vector.load %arg6[%c0_12, %c0_13] : memref<1x16xf32, #tpu.memory_space<vmem>>, vector<1x16xf32>
    %18 = arith.extf %16 : vector<8x16xbf16> to vector<8x16xf32>
    %19 = vector.broadcast %17 : vector<1x16xf32> to vector<8x16xf32>
    %20 = arith.mulf %18, %19 : vector<8x16xf32>
    %cst_14 = arith.constant dense<0.000000e+00> : vector<8xf32>
    %21 = vector.multi_reduction <add>, %20, %cst_14 [1] : vector<8x16xf32> to vector<8xf32>
    %22 = vector.shape_cast %21 : vector<8xf32> to vector<8x1xf32>
    %c0_15 = arith.constant 0 : index
    %c0_16 = arith.constant 0 : index
    %23 = vector.load %arg7[%c0_15, %c0_16] : memref<1x1xf32, #tpu.memory_space<vmem>>, vector<1x1xf32>
    %24 = vector.broadcast %23 : vector<1x1xf32> to vector<8x1xf32>
    %25 = arith.addf %22, %24 : vector<8x1xf32>
    %c0_17 = arith.constant 0 : index
    %c0_18 = arith.constant 0 : index
    %26 = vector.load %arg8[%c0_17, %c0_18] : memref<8x1xf32, #tpu.memory_space<vmem>>, vector<8x1xf32>
    tpu.vector_store %arg8[%c0_17, %c0_18], %25 {strides = array<i32>} : memref<8x1xf32, #tpu.memory_space<vmem>>, vector<8x1xf32>,
    return
  }
  func.func @transform_0(%arg0: i32) -> (i32, i32) {
    %c0_i32 = arith.constant 0 : i32
    %c0_i32_0 = arith.constant 0 : i32
    return %arg0, %c0_i32 : i32, i32
  }
  func.func @transform_1(%arg0: i32) -> (i32, i32) {
    %c0_i32 = arith.constant 0 : i32
    %c0_i32_0 = arith.constant 0 : i32
    %c0_i32_1 = arith.constant 0 : i32
    return %c0_i32, %c0_i32_0 : i32, i32
  }
  func.func @transform_2(%arg0: i32) -> (i32, i32) {
    %c0_i32 = arith.constant 0 : i32
    %c0_i32_0 = arith.constant 0 : i32
    %c0_i32_1 = arith.constant 0 : i32
    return %c0_i32, %c0_i32_0 : i32, i32
  }
  func.func @transform_3(%arg0: i32) -> (i32, i32) {
    %c0_i32 = arith.constant 0 : i32
    %c0_i32_0 = arith.constant 0 : i32
    %c0_i32_1 = arith.constant 0 : i32
    return %c0_i32, %c0_i32_0 : i32, i32
  }
  func.func @transform_4(%arg0: i32) -> (i32, i32) {
    %c0_i32 = arith.constant 0 : i32
    %c0_i32_0 = arith.constant 0 : i32
    %c0_i32_1 = arith.constant 0 : i32
    return %c0_i32, %c0_i32_0 : i32, i32
  }
  func.func @transform_5(%arg0: i32) -> (i32, i32) {
    %c0_i32 = arith.constant 0 : i32
    %c0_i32_0 = arith.constant 0 : i32
    %c0_i32_1 = arith.constant 0 : i32
    return %c0_i32, %c0_i32_0 : i32, i32
  }
  func.func @transform_6(%arg0: i32) -> (i32, i32) {
    %c0_i32 = arith.constant 0 : i32
    %c0_i32_0 = arith.constant 0 : i32
    %c0_i32_1 = arith.constant 0 : i32
    return %c0_i32, %c0_i32_0 : i32, i32
  }
  func.func @transform_7(%arg0: i32) -> (i32, i32) {
    %c0_i32 = arith.constant 0 : i32
    %c0_i32_0 = arith.constant 0 : i32
    return %arg0, %c0_i32 : i32, i32
  }
}

module attributes {stable_mosaic.version = 11 : i64} {
  func.func @kernel(%arg0: i32, %arg1: memref<8x16xbf16, #tpu.memory_space<vmem>>, %arg2: memref<16x32xbf16, #tpu.memory_space<vmem>>, %arg3: memref<1x32xf32, #tpu.memory_space<vmem>>, %arg4: memref<32x16xbf16, #tpu.memory_space<vmem>>, %arg5: memref<1x16xf32, #tpu.memory_space<vmem>>, %arg6: memref<1x16xf32, #tpu.memory_space<vmem>>, %arg7: memref<1x1xf32, #tpu.memory_space<vmem>>, %arg8: memref<8x1xf32, #tpu.memory_space<vmem>>) attributes {dimension_semantics = [#tpu.dimension_semantics<parallel>], iteration_bounds = array<i64: 1>, scalar_prefetch = 0 : i64, scratch_operands = 0 : i64, tpu.core_type = #tpu.core_type<tc>, window_params = [{transform_indices = @transform_0, window_bounds = array<i64: 8, 16>}, {pipeline_mode = #tpu.pipeline_mode<synchronous>, transform_indices = @transform_1, window_bounds = array<i64: 16, 32>}, {pipeline_mode = #tpu.pipeline_mode<synchronous>, transform_indices = @transform_2, window_bounds = array<i64: 1, 32>}, {pipeline_mode = #tpu.pipeline_mode<synchronous>, transform_indices = @transform_3, window_bounds = array<i64: 32, 16>}, {pipeline_mode = #tpu.pipeline_mode<synchronous>, transform_indices = @transform_4, window_bounds = array<i64: 1, 16>}, {pipeline_mode = #tpu.pipeline_mode<synchronous>, transform_indices = @transform_5, window_bounds = array<i64: 1, 16>}, {pipeline_mode = #tpu.pipeline_mode<synchronous>, transform_indices = @transform_6, window_bounds = array<i64: 1, 1>}, {transform_indices = @transform_7, window_bounds = array<i64: 8, 1>}]} {
    %c0 = arith.constant 0 : index
    %c0_0 = arith.constant 0 : index
    %0 = vector.load %arg1[%c0, %c0_0] : memref<8x16xbf16, #tpu.memory_space<vmem>>, vector<8x16xbf16>
    %c0_1 = arith.constant 0 : index
    %c0_2 = arith.constant 0 : index
    %1 = vector.load %arg2[%c0_1, %c0_2] : memref<16x32xbf16, #tpu.memory_space<vmem>>, vector<16x32xbf16>
    %cst = arith.constant dense<0.000000e+00> : vector<8x32xf32>
    %2 = tpu.matmul %0, %1, %cst {dimension_numbers = #tpu.dot_dimension_numbers<[1], [0], [0], [1], [0, 0, 1, 1], [], []>} : vector<8x16xbf16>, vector<16x32xbf16>, vector<8x32xf32> -> vector<8x32xf32>
    %c0_3 = arith.constant 0 : index
    %c0_4 = arith.constant 0 : index
    %3 = vector.load %arg3[%c0_3, %c0_4] : memref<1x32xf32, #tpu.memory_space<vmem>>, vector<1x32xf32>
    %4 = vector.broadcast %3 : vector<1x32xf32> to vector<8x32xf32>
    %5 = arith.addf %2, %4 : vector<8x32xf32>
    %cst_5 = arith.constant 0.000000e+00 : f32
    %6 = vector.broadcast %cst_5 : f32 to vector<8x32xf32>
    %7 = arith.maximumf %5, %6 : vector<8x32xf32>
    %8 = arith.truncf %7 : vector<8x32xf32> to vector<8x32xbf16>
    %c0_6 = arith.constant 0 : index
    %c0_7 = arith.constant 0 : index
    %9 = vector.load %arg4[%c0_6, %c0_7] : memref<32x16xbf16, #tpu.memory_space<vmem>>, vector<32x16xbf16>
    %cst_8 = arith.constant dense<0.000000e+00> : vector<8x16xf32>
    %10 = tpu.matmul %8, %9, %cst_8 {dimension_numbers = #tpu.dot_dimension_numbers<[1], [0], [0], [1], [0, 0, 1, 1], [], []>} : vector<8x32xbf16>, vector<32x16xbf16>, vector<8x16xf32> -> vector<8x16xf32>
    %c0_9 = arith.constant 0 : index
    %c0_10 = arith.constant 0 : index
    %11 = vector.load %arg5[%c0_9, %c0_10] : memref<1x16xf32, #tpu.memory_space<vmem>>, vector<1x16xf32>
    %12 = vector.broadcast %11 : vector<1x16xf32> to vector<8x16xf32>
    %13 = arith.addf %10, %12 : vector<8x16xf32>
    %cst_11 = arith.constant 0.000000e+00 : f32
    %14 = vector.broadcast %cst_11 : f32 to vector<8x16xf32>
    %15 = arith.maximumf %13, %14 : vector<8x16xf32>
    %16 = arith.truncf %15 : vector<8x16xf32> to vector<8x16xbf16>
    %c0_12 = arith.constant 0 : index
    %c0_13 = arith.constant 0 : index
    %17 = vector.load %arg6[%c0_12, %c0_13] : memref<1x16xf32, #tpu.memory_space<vmem>>, vector<1x16xf32>
    %18 = arith.extf %16 : vector<8x16xbf16> to vector<8x16xf32>
    %19 = vector.broadcast %17 : vector<1x16xf32> to vector<8x16xf32>
    %20 = arith.mulf %18, %19 : vector<8x16xf32>
    %cst_14 = arith.constant dense<0.000000e+00> : vector<8xf32>
    %21 = vector.multi_reduction <add>, %20, %cst_14 [1] : vector<8x16xf32> to vector<8xf32>
    %22 = vector.shape_cast %21 : vector<8xf32> to vector<8x1xf32>
    %c0_15 = arith.constant 0 : index
    %c0_16 = arith.constant 0 : index
    %23 = vector.load %arg7[%c0_15, %c0_16] : memref<1x1xf32, #tpu.memory_space<vmem>>, vector<1x1xf32>
    %24 = vector.broadcast %23 : vector<1x1xf32> to vector<8x1xf32>
    %25 = arith.addf %22, %24 : vector<8x1xf32>
    %c0_17 = arith.constant 0 : index
    %c0_18 = arith.constant 0 : index
    %26 = vector.load %arg8[%c0_17, %c0_18] : memref<8x1xf32, #tpu.memory_space<vmem>>, vector<8x1xf32>
    tpu.vector_store %arg8[%c0_17, %c0_18], %25 {strides = array<i32>} : memref<8x1xf32, #tpu.memory_space<vmem>>, vector<8x1xf32>,
    return
  }
  func.func @transform_0(%arg0: i32) -> (i32, i32) {
    %c0_i32 = arith.constant 0 : i32
    %c0_i32_0 = arith.constant 0 : i32
    return %arg0, %c0_i32 : i32, i32
  }
  func.func @transform_1(%arg0: i32) -> (i32, i32) {
    %c0_i32 = arith.constant 0 : i32
    %c0_i32_0 = arith.constant 0 : i32
    %c0_i32_1 = arith.constant 0 : i32
    return %c0_i32, %c0_i32_0 : i32, i32
  }
  func.func @transform_2(%arg0: i32) -> (i32, i32) {
    %c0_i32 = arith.constant 0 : i32
    %c0_i32_0 = arith.constant 0 : i32
    %c0_i32_1 = arith.constant 0 : i32
    return %c0_i32, %c0_i32_0 : i32, i32
  }
  func.func @transform_3(%arg0: i32) -> (i32, i32) {
    %c0_i32 = arith.constant 0 : i32
    %c0_i32_0 = arith.constant 0 : i32
    %c0_i32_1 = arith.constant 0 : i32
    return %c0_i32, %c0_i32_0 : i32, i32
  }
  func.func @transform_4(%arg0: i32) -> (i32, i32) {
    %c0_i32 = arith.constant 0 : i32
    %c0_i32_0 = arith.constant 0 : i32
    %c0_i32_1 = arith.constant 0 : i32
    return %c0_i32, %c0_i32_0 : i32, i32
  }
  func.func @transform_5(%arg0: i32) -> (i32, i32) {
    %c0_i32 = arith.constant 0 : i32
    %c0_i32_0 = arith.constant 0 : i32
    %c0_i32_1 = arith.constant 0 : i32
    return %c0_i32, %c0_i32_0 : i32, i32
  }
  func.func @transform_6(%arg0: i32) -> (i32, i32) {
    %c0_i32 = arith.constant 0 : i32
    %c0_i32_0 = arith.constant 0 : i32
    %c0_i32_1 = arith.constant 0 : i32
    return %c0_i32, %c0_i32_0 : i32, i32
  }
  func.func @transform_7(%arg0: i32) -> (i32, i32) {
    %c0_i32 = arith.constant 0 : i32
    %c0_i32_0 = arith.constant 0 : i32
    return %arg0, %c0_i32 : i32, i32
  }
}

</mosaic_0001>

<llo_original>
// kernel: _mlp_forward.1
$region0: #{_mlp_forward.1}
  #allocation0 [shape = 'u32[]', space=smem, size = 0x4, offset = 0x4, fixed_abs, tag = 'smem constant byte address 0x4 - core index']
  #allocation1 [shape = 'u32[72,128]{1,0:T(1,128)}', space=vmem, size = 0x9000, scoped, tag = 'internal scratch']
  #allocation2 [shape = 'f32[1,1]{1,0:T(1,128)S(1)}', space=vmem, size = 0x200, scoped, tag = 'scoped memory for _mlp_forward.1']
  %s0 = inlined_call_operand.vmem [shape: bf16[8,16], index: 0, kind: input, shape index: {}]
  %s1 = inlined_call_operand.vmem [shape: bf16[16,32], index: 1, kind: input, shape index: {}]
  %s2 = inlined_call_operand.vmem [shape: f32[1,32], index: 2, kind: input, shape index: {}]
  %s3 = inlined_call_operand.vmem [shape: bf16[32,16], index: 3, kind: input, shape index: {}]
  %s4 = inlined_call_operand.vmem [shape: f32[1,16], index: 4, kind: input, shape index: {}]
  %s5 = inlined_call_operand.vmem [shape: f32[1,16], index: 5, kind: input, shape index: {}]
  %s6 = inlined_call_operand.<no memory space> [shape: f32[1,1], index: 6, kind: input, shape index: {}]
  %s7 = inlined_call_operand.vmem [shape: f32[8,1], index: 7, kind: output, shape index: {}]
  %s8 = sld [smem:[#allocation0]]
  $region38: #{_mlp_forward.1} parent=0
    _
  %s10 = ssub.s32 1, %s8
  %s11 = scalar_select 0, %s10, %s8
  %v12 = vstv %s6
  %13 = vst [vmem:[#allocation2] sm:$0x1] %v12
  // Predicated region
  $region2: #{_mlp_forward.1} parent=0 // pred_check
    _
  $region3: #{_mlp_forward.1} parent=0 // pred_check_branch
    %15 = sbr.rel (0) target = $region5
  $region4: #{_mlp_forward.1} parent=0 // pred_region
    _
  $region5: #{_mlp_forward.1} parent=0 // pred_fallthru
    _
  // Predicated region
  $region6: #{_mlp_forward.1} parent=0 // pred_check
    _
  $region7: #{_mlp_forward.1} parent=0 // pred_check_branch
    %17 = sbr.rel (0) target = $region9
  $region8: #{_mlp_forward.1} parent=0 // pred_region
    _
  $region9: #{_mlp_forward.1} parent=0 // pred_fallthru
    _
  // Predicated region
  $region10: #{_mlp_forward.1} parent=0 // pred_check
    _
  $region11: #{_mlp_forward.1} parent=0 // pred_check_branch
    %19 = sbr.rel (0) target = $region13
  $region12: #{_mlp_forward.1} parent=0 // pred_region
    _
  $region13: #{_mlp_forward.1} parent=0 // pred_fallthru
    _
  // Predicated region
  $region14: #{_mlp_forward.1} parent=0 // pred_check
    _
  $region15: #{_mlp_forward.1} parent=0 // pred_check_branch
    %21 = sbr.rel (0) target = $region17
  $region16: #{_mlp_forward.1} parent=0 // pred_region
    _
  $region17: #{_mlp_forward.1} parent=0 // pred_fallthru
    _
  // Predicated region
  $region18: #{_mlp_forward.1} parent=0 // pred_check
    _
  $region19: #{_mlp_forward.1} parent=0 // pred_check_branch
    %23 = sbr.rel (0) target = $region21
  $region20: #{_mlp_forward.1} parent=0 // pred_region
    _
  $region21: #{_mlp_forward.1} parent=0 // pred_fallthru
    _
  // Predicated region
  $region22: #{_mlp_forward.1} parent=0 // pred_check
    _
  $region23: #{_mlp_forward.1} parent=0 // pred_check_branch
    %25 = sbr.rel (0) target = $region25
  $region24: #{_mlp_forward.1} parent=0 // pred_region
    _
  $region25: #{_mlp_forward.1} parent=0 // pred_fallthru
    _
  // Predicated region
  $region26: #{_mlp_forward.1} parent=0 // pred_check
    _
  $region27: #{_mlp_forward.1} parent=0 // pred_check_branch
    %27 = sbr.rel (0) target = $region29
  $region28: #{_mlp_forward.1} parent=0 // pred_region
    _
  $region29: #{_mlp_forward.1} parent=0 // pred_fallthru
    _
  %v29 = vld [vmem:[%s0] sm:$0xf]
  %v30 = vld [vmem:[%s1] sm:$0xf]
  %v31 = vld [vmem:[%s1 + $0x4] sm:$0xf]
  %v32 = vld [vmem:[%s2] sm:$0x1]
  %v34 = vperm.slane %v32, 0
  %v38 = vunpack.c.l.b16 %v30
  %v39 = vunpack.c.l.b16 %v31
  %v40 = vpack.c.b16 %v39, %v38
  %vm42 = vcmask 130048
  %v44 = vsel %vm42, %v29, 0
  %46 = vmatpush.bf16.msra.mxu0 0
  %47 = vmatpush.bf16.msra.mxu0 0
  %48 = vmatpush.bf16.msra.mxu0 0
  %49 = vmatpush.bf16.msra.mxu0 0
  %50 = vmatpush.bf16.msra.mxu0 0
  %51 = vmatpush.bf16.msra.mxu0 0
  %52 = vmatpush.bf16.msra.mxu0 0
  %53 = vmatpush.bf16.msra.mxu0 %v40
  %54 = vmatmul.bf16.gmra.mxu0 %v44
  %v55 = vpop.f32.mrf.mxu0
  %v56 = vadd.f32 %v34, %v55
  %v57 = vpop.f32.mrf.mxu0
  %58 = vdwg.mxu0
  %v59 = vmax.f32 %v56, 0.0
  %v60 = vpack.c.bf16 %v59, %v59
  %v61 = vld [vmem:[%s3] sm:$0xf]
  %v62 = vld [vmem:[%s3 + $0x4] sm:$0xf]
  %v63 = vld [vmem:[%s3 + $0x8] sm:$0xf]
  %v64 = vld [vmem:[%s3 + $0xc] sm:$0xf]
  %v65 = vld [vmem:[%s4] sm:$0x1]
  %v67 = vperm.slane %v65, 0
  %v73 = vunpack.c.l.b16 %v61
  %v74 = vunpack.c.l.b16 %v62
  %v75 = vunpack.c.l.b16 %v63
  %v76 = vunpack.c.l.b16 %v64
  %v77 = vpack.c.b16 %v74, %v73
  %v78 = vpack.c.b16 %v76, %v75
  %vm81 = vcmask 261120
  %v83 = vsel %vm81, %v60, 0
  %85 = vmatpush.bf16.msra.mxu0 0
  %86 = vmatpush.bf16.msra.mxu0 0
  %87 = vmatpush.bf16.msra.mxu0 0
  %88 = vmatpush.bf16.msra.mxu0 0
  %89 = vmatpush.bf16.msra.mxu0 0
  %90 = vmatpush.bf16.msra.mxu0 0
  %91 = vmatpush.bf16.msra.mxu0 %v78
  %92 = vmatpush.bf16.msra.mxu0 %v77
  %93 = vmatmul.bf16.gmra.mxu0 %v83
  %v94 = vpop.f32.mrf.mxu0
  %v95 = vadd.f32 %v67, %v94
  %v96 = vpop.f32.mrf.mxu0
  %97 = vdwg.mxu0
  %v98 = vmax.f32 %v95, 0.0
  %v99 = vpack.c.bf16 %v98, %v98
  %v100 = vld [vmem:[%s5] sm:$0x1]
  %v101 = vunpack.c.l.bf16 %v99
  %v103 = vperm.slane %v100, 0
  %v105 = vmul.f32 %v101, %v103
  %v106 = vsel %vm42, %v105, 0.0
  %107 = vadd.xlane.f32.xlu0 %v106
  %v108 = vpop.xlane.xlu0 %107
  %v109 = vld [vmem:[#allocation2] sm:$0x1]
  %v111 = vperm.slane %v109, 0
  %v113 = vadd.f32 %v108, %v111
  %vm114 = vcmask 7168
  %115 = vst.msk [vmem:[%s7] sm:$0xff] %vm114, %v113
  // Predicated region
  $region30: #{_mlp_forward.1} parent=0 // pred_check
    _
  $region31: #{_mlp_forward.1} parent=0 // pred_check_branch
    %117 = sbr.rel (0) target = $region33
  $region32: #{_mlp_forward.1} parent=0 // pred_region
    _
  $region33: #{_mlp_forward.1} parent=0 // pred_fallthru
    _
  // Predicated region
  $region34: #{_mlp_forward.1} parent=0 // pred_check
    _
  $region35: #{_mlp_forward.1} parent=0 // pred_check_branch
    %119 = sbr.rel (0) target = $region37
  $region36: #{_mlp_forward.1} parent=0 // pred_region
    _
  $region37: #{_mlp_forward.1} parent=0 // pred_fallthru
    _

// kernel: _mlp_forward.1
$region0: #{_mlp_forward.1}
  #allocation0 [shape = 'u32[]', space=smem, size = 0x4, offset = 0x4, fixed_abs, tag = 'smem constant byte address 0x4 - core index']
  #allocation1 [shape = 'u32[72,128]{1,0:T(1,128)}', space=vmem, size = 0x9000, scoped, tag = 'internal scratch']
  #allocation2 [shape = 'f32[1,1]{1,0:T(1,128)S(1)}', space=vmem, size = 0x200, scoped, tag = 'scoped memory for _mlp_forward.1']
  %s0 = inlined_call_operand.vmem [shape: bf16[8,16], index: 0, kind: input, shape index: {}]
  %s1 = inlined_call_operand.vmem [shape: bf16[16,32], index: 1, kind: input, shape index: {}]
  %s2 = inlined_call_operand.vmem [shape: f32[1,32], index: 2, kind: input, shape index: {}]
  %s3 = inlined_call_operand.vmem [shape: bf16[32,16], index: 3, kind: input, shape index: {}]
  %s4 = inlined_call_operand.vmem [shape: f32[1,16], index: 4, kind: input, shape index: {}]
  %s5 = inlined_call_operand.vmem [shape: f32[1,16], index: 5, kind: input, shape index: {}]
  %s6 = inlined_call_operand.<no memory space> [shape: f32[1,1], index: 6, kind: input, shape index: {}]
  %s7 = inlined_call_operand.vmem [shape: f32[8,1], index: 7, kind: output, shape index: {}]
  %s8 = sld [smem:[#allocation0]]
  $region38: #{_mlp_forward.1} parent=0
    _
  %s10 = ssub.s32 1, %s8
  %s11 = scalar_select 0, %s10, %s8
  %v12 = vstv %s6
  %13 = vst [vmem:[#allocation2] sm:$0x1] %v12
  // Predicated region
  $region2: #{_mlp_forward.1} parent=0 // pred_check
    _
  $region3: #{_mlp_forward.1} parent=0 // pred_check_branch
    %15 = sbr.rel (0) target = $region5
  $region4: #{_mlp_forward.1} parent=0 // pred_region
    _
  $region5: #{_mlp_forward.1} parent=0 // pred_fallthru
    _
  // Predicated region
  $region6: #{_mlp_forward.1} parent=0 // pred_check
    _
  $region7: #{_mlp_forward.1} parent=0 // pred_check_branch
    %17 = sbr.rel (0) target = $region9
  $region8: #{_mlp_forward.1} parent=0 // pred_region
    _
  $region9: #{_mlp_forward.1} parent=0 // pred_fallthru
    _
  // Predicated region
  $region10: #{_mlp_forward.1} parent=0 // pred_check
    _
  $region11: #{_mlp_forward.1} parent=0 // pred_check_branch
    %19 = sbr.rel (0) target = $region13
  $region12: #{_mlp_forward.1} parent=0 // pred_region
    _
  $region13: #{_mlp_forward.1} parent=0 // pred_fallthru
    _
  // Predicated region
  $region14: #{_mlp_forward.1} parent=0 // pred_check
    _
  $region15: #{_mlp_forward.1} parent=0 // pred_check_branch
    %21 = sbr.rel (0) target = $region17
  $region16: #{_mlp_forward.1} parent=0 // pred_region
    _
  $region17: #{_mlp_forward.1} parent=0 // pred_fallthru
    _
  // Predicated region
  $region18: #{_mlp_forward.1} parent=0 // pred_check
    _
  $region19: #{_mlp_forward.1} parent=0 // pred_check_branch
    %23 = sbr.rel (0) target = $region21
  $region20: #{_mlp_forward.1} parent=0 // pred_region
    _
  $region21: #{_mlp_forward.1} parent=0 // pred_fallthru
    _
  // Predicated region
  $region22: #{_mlp_forward.1} parent=0 // pred_check
    _
  $region23: #{_mlp_forward.1} parent=0 // pred_check_branch
    %25 = sbr.rel (0) target = $region25
  $region24: #{_mlp_forward.1} parent=0 // pred_region
    _
  $region25: #{_mlp_forward.1} parent=0 // pred_fallthru
    _
  // Predicated region
  $region26: #{_mlp_forward.1} parent=0 // pred_check
    _
  $region27: #{_mlp_forward.1} parent=0 // pred_check_branch
    %27 = sbr.rel (0) target = $region29
  $region28: #{_mlp_forward.1} parent=0 // pred_region
    _
  $region29: #{_mlp_forward.1} parent=0 // pred_fallthru
    _
  %v29 = vld [vmem:[%s0] sm:$0xf]
  %v30 = vld [vmem:[%s1] sm:$0xf]
  %v31 = vld [vmem:[%s1 + $0x4] sm:$0xf]
  %v32 = vld [vmem:[%s2] sm:$0x1]
  %v34 = vperm.slane %v32, 0
  %v38 = vunpack.c.l.b16 %v30
  %v39 = vunpack.c.l.b16 %v31
  %v40 = vpack.c.b16 %v39, %v38
  %vm42 = vcmask 130048
  %v44 = vsel %vm42, %v29, 0
  %46 = vmatpush.bf16.msra.mxu0 0
  %47 = vmatpush.bf16.msra.mxu0 0
  %48 = vmatpush.bf16.msra.mxu0 0
  %49 = vmatpush.bf16.msra.mxu0 0
  %50 = vmatpush.bf16.msra.mxu0 0
  %51 = vmatpush.bf16.msra.mxu0 0
  %52 = vmatpush.bf16.msra.mxu0 0
  %53 = vmatpush.bf16.msra.mxu0 %v40
  %54 = vmatmul.bf16.gmra.mxu0 %v44
  %v55 = vpop.f32.mrf.mxu0
  %v56 = vadd.f32 %v34, %v55
  %v57 = vpop.f32.mrf.mxu0
  %58 = vdwg.mxu0
  %v59 = vmax.f32 %v56, 0.0
  %v60 = vpack.c.bf16 %v59, %v59
  %v61 = vld [vmem:[%s3] sm:$0xf]
  %v62 = vld [vmem:[%s3 + $0x4] sm:$0xf]
  %v63 = vld [vmem:[%s3 + $0x8] sm:$0xf]
  %v64 = vld [vmem:[%s3 + $0xc] sm:$0xf]
  %v65 = vld [vmem:[%s4] sm:$0x1]
  %v67 = vperm.slane %v65, 0
  %v73 = vunpack.c.l.b16 %v61
  %v74 = vunpack.c.l.b16 %v62
  %v75 = vunpack.c.l.b16 %v63
  %v76 = vunpack.c.l.b16 %v64
  %v77 = vpack.c.b16 %v74, %v73
  %v78 = vpack.c.b16 %v76, %v75
  %vm81 = vcmask 261120
  %v83 = vsel %vm81, %v60, 0
  %85 = vmatpush.bf16.msra.mxu0 0
  %86 = vmatpush.bf16.msra.mxu0 0
  %87 = vmatpush.bf16.msra.mxu0 0
  %88 = vmatpush.bf16.msra.mxu0 0
  %89 = vmatpush.bf16.msra.mxu0 0
  %90 = vmatpush.bf16.msra.mxu0 0
  %91 = vmatpush.bf16.msra.mxu0 %v78
  %92 = vmatpush.bf16.msra.mxu0 %v77
  %93 = vmatmul.bf16.gmra.mxu0 %v83
  %v94 = vpop.f32.mrf.mxu0
  %v95 = vadd.f32 %v67, %v94
  %v96 = vpop.f32.mrf.mxu0
  %97 = vdwg.mxu0
  %v98 = vmax.f32 %v95, 0.0
  %v99 = vpack.c.bf16 %v98, %v98
  %v100 = vld [vmem:[%s5] sm:$0x1]
  %v101 = vunpack.c.l.bf16 %v99
  %v103 = vperm.slane %v100, 0
  %v105 = vmul.f32 %v101, %v103
  %v106 = vsel %vm42, %v105, 0.0
  %107 = vadd.xlane.f32.xlu0 %v106
  %v108 = vpop.xlane.xlu0 %107
  %v109 = vld [vmem:[#allocation2] sm:$0x1]
  %v111 = vperm.slane %v109, 0
  %v113 = vadd.f32 %v108, %v111
  %vm114 = vcmask 7168
  %115 = vst.msk [vmem:[%s7] sm:$0xff] %vm114, %v113
  // Predicated region
  $region30: #{_mlp_forward.1} parent=0 // pred_check
    _
  $region31: #{_mlp_forward.1} parent=0 // pred_check_branch
    %117 = sbr.rel (0) target = $region33
  $region32: #{_mlp_forward.1} parent=0 // pred_region
    _
  $region33: #{_mlp_forward.1} parent=0 // pred_fallthru
    _
  // Predicated region
  $region34: #{_mlp_forward.1} parent=0 // pred_check
    _
  $region35: #{_mlp_forward.1} parent=0 // pred_check_branch
    %119 = sbr.rel (0) target = $region37
  $region36: #{_mlp_forward.1} parent=0 // pred_region
    _
  $region37: #{_mlp_forward.1} parent=0 // pred_fallthru
    _

</llo_original>
